<compile_context>
chip_gen: v5e
topology: v5e:2x2
jax: 0.10.0
libtpu: 0.0.40
codegen_flags: <defaults>
</compile_context>

<pallas_src>
import functools

import jax
import jax.numpy as jnp
from jax.experimental import pallas as pl
from jax.experimental.pallas import tpu as pltpu


def _round_up(x, m):
    return (x + m - 1) // m * m


# ---------------------------------------------------------------------------
# Kernels
# ---------------------------------------------------------------------------
def _linear_single_pass_kernel(x_ref, w_ref, b_ref, o_ref):
    """Whole-K tile: o = x @ W + b in one shot (no scratch, no branches)."""
    o_ref[...] = (
        jnp.dot(x_ref[...], w_ref[...], preferred_element_type=jnp.float32)
        + b_ref[...].astype(jnp.float32)
    ).astype(o_ref.dtype)


def _linear_ksplit_kernel(x_ref, w_ref, b_ref, o_ref, acc_ref):
    """K split over grid axis 2: init accumulator with bias, accumulate, store."""
    k = pl.program_id(2)

    @pl.when(k == 0)
    def _():
        # Bias folded into the (required) init store -> no epilogue add.
        acc_ref[...] = jnp.broadcast_to(
            b_ref[...].astype(jnp.float32), acc_ref.shape
        )

    acc_ref[...] += jnp.dot(
        x_ref[...], w_ref[...], preferred_element_type=jnp.float32
    )

    @pl.when(k == pl.num_programs(2) - 1)
    def _():
        o_ref[...] = acc_ref[...].astype(o_ref.dtype)


# ---------------------------------------------------------------------------
# Wrapper
# ---------------------------------------------------------------------------
@functools.partial(jax.jit, static_argnames=("tm_cap", "tn_cap", "tk_cap"))
def sparse_input_linear(x, weight, bias, *, tm_cap=256, tn_cap=256, tk_cap=512):
    """Pallas implementation of SparseInputLinear.forward: x @ weight + bias."""
    M, K = x.shape
    K2, N = weight.shape
    assert K == K2, "inner dims must match"
    out_dtype = x.dtype
    itemsize = jnp.dtype(x.dtype).itemsize

    # Adaptive tile sizes: 8/128-aligned, capped at MXU-friendly 256-class tiles
    # (comfortably inside the default scoped-VMEM budget on v5e/v6e/v7x).
    tm = min(tm_cap, _round_up(M, 8))
    tn = min(tn_cap, _round_up(N, 128))

    # If K is modest, keep it resident in one tile and drop the reduction axis.
    k_single_max = 2048
    if K <= k_single_max:
        tk = _round_up(K, 128)
        k_split = False
    else:
        tk = tk_cap
        k_split = True

    Mp, Np, Kp = _round_up(M, tm), _round_up(N, tn), _round_up(K, tk)

    # Pad to tile multiples (zero padding contributes nothing to the matmul).
    xp = x if (Mp == M and Kp == K) else jnp.pad(x, ((0, Mp - M), (0, Kp - K)))
    wp = (
        weight
        if (Kp == K and Np == N)
        else jnp.pad(weight, ((0, Kp - K), (0, Np - N)))
    )
    bp = bias if Np == N else jnp.pad(bias, ((0, Np - N),))
    b2 = bp.reshape(1, Np)  # lane-dense bias row

    cost = pl.CostEstimate(
        flops=2 * Mp * Np * Kp,
        transcendentals=0,
        bytes_accessed=itemsize * (Mp * Kp + Kp * Np + Mp * Np + Np),
    )

    if not k_split:
        # Grid (j, i): i (row blocks) is innermost, so the W column block
        # (0, j) is constant across consecutive steps -> W read from HBM once
        # per column block instead of once per output tile.
        grid = (Np // tn, Mp // tm)
        out = pl.pallas_call(
            _linear_single_pass_kernel,
            out_shape=jax.ShapeDtypeStruct((Mp, Np), out_dtype),
            grid_spec=pltpu.PrefetchScalarGridSpec(
                num_scalar_prefetch=0,
                grid=grid,
                in_specs=[
                    pl.BlockSpec((tm, tk), lambda j, i: (i, 0)),  # x row block
                    pl.BlockSpec((tk, tn), lambda j, i: (0, j)),  # W col block (reused)
                    pl.BlockSpec((1, tn), lambda j, i: (0, j)),   # bias block
                ],
                out_specs=pl.BlockSpec((tm, tn), lambda j, i: (i, j)),
            ),
            compiler_params=pltpu.CompilerParams(
                dimension_semantics=("parallel", "parallel")
            ),
            cost_estimate=cost,
        )(xp, wp, b2)
    else:
        grid = (Mp // tm, Np // tn, Kp // tk)
        out = pl.pallas_call(
            _linear_ksplit_kernel,
            out_shape=jax.ShapeDtypeStruct((Mp, Np), out_dtype),
            grid_spec=pltpu.PrefetchScalarGridSpec(
                num_scalar_prefetch=0,
                grid=grid,
                in_specs=[
                    pl.BlockSpec((tm, tk), lambda i, j, k: (i, k)),  # x tile
                    pl.BlockSpec((tk, tn), lambda i, j, k: (k, j)),  # W tile
                    pl.BlockSpec((1, tn), lambda i, j, k: (0, j)),   # bias tile
                ],
                out_specs=pl.BlockSpec((tm, tn), lambda i, j, k: (i, j)),
                scratch_shapes=[pltpu.VMEM((tm, tn), jnp.float32)],
            ),
            compiler_params=pltpu.CompilerParams(
                dimension_semantics=("parallel", "parallel", "arbitrary")
            ),
            cost_estimate=cost,
        )(xp, wp, b2)

    if Mp != M or Np != N:
        out = out[:M, :N]
    return out


def init_params(key, inp_dim, out_dim):
    """Deterministic re-implementation of SparseInputLinear.reset_parameters()."""
    stdv = 1.0 / jnp.sqrt(jnp.float32(out_dim))  # weight.size(1) == out_dim
    kw, kb = jax.random.split(key)
    weight = jax.random.uniform(
        kw, (inp_dim, out_dim), dtype=jnp.float32, minval=-stdv, maxval=stdv
    )
    bias = jax.random.uniform(
        kb, (out_dim,), dtype=jnp.float32, minval=-stdv, maxval=stdv
    )
    return weight, bias


if __name__ == "__main__":
    key = jax.random.PRNGKey(0)
    k_x1, k_p1, k_x2, k_p2 = jax.random.split(key, 4)

    # --- Case 1: typical small shape, single-pass (K-resident) path ---------
    M, inp_dim, out_dim = 256, 384, 512
    x = jax.random.normal(k_x1, (M, inp_dim), dtype=jnp.float32)
    weight, bias = init_params(k_p1, inp_dim, out_dim)

    out = sparse_input_linear(x, weight, bias)
    out = jax.block_until_ready(out)

    ref = x @ weight + bias
    assert out.shape == (M, out_dim)
    assert jnp.allclose(out, ref, atol=1e-4, rtol=1e-5), "mismatch (single-pass)"

    # --- Case 2: large K + non-tile-aligned M exercises the K-split path ----
    M2, inp_dim2, out_dim2 = 70, 2304, 256  # K > 2048 -> k grid axis; M padded
    x2 = jax.random.normal(k_x2, (M2, inp_dim2), dtype=jnp.float32)
    weight2, bias2 = init_params(k_p2, inp_dim2, out_dim2)

    out2 = sparse_input_linear(x2, weight2, bias2)
    out2 = jax.block_until_ready(out2)

    ref2 = x2 @ weight2 + bias2
    assert out2.shape == (M2, out_dim2)
    assert jnp.allclose(out2, ref2, atol=1e-4, rtol=1e-5), "mismatch (k-split)"

    print("KERNEL_OK")
</pallas_src>

<mosaic_0001>
module attributes {stable_mosaic.version = 11 : i64} {
  func.func @_linear_single_pass_kernel(%arg0: i32, %arg1: i32, %arg2: memref<256x384xf32, #tpu.memory_space<vmem>>, %arg3: memref<384x256xf32, #tpu.memory_space<vmem>>, %arg4: memref<1x256xf32, #tpu.memory_space<vmem>>, %arg5: memref<256x256xf32, #tpu.memory_space<vmem>>) attributes {dimension_semantics = [#tpu.dimension_semantics<parallel>, #tpu.dimension_semantics<parallel>], iteration_bounds = array<i64: 2, 1>, scalar_prefetch = 0 : i64, scratch_operands = 0 : i64, tpu.core_type = #tpu.core_type<tc>, window_params = [{transform_indices = @transform_0, window_bounds = array<i64: 256, 384>}, {transform_indices = @transform_1, window_bounds = array<i64: 384, 256>}, {transform_indices = @transform_2, window_bounds = array<i64: 1, 256>}, {transform_indices = @transform_3, window_bounds = array<i64: 256, 256>}]} {
    %c0 = arith.constant 0 : index
    %c0_0 = arith.constant 0 : index
    %0 = vector.load %arg2[%c0, %c0_0] : memref<256x384xf32, #tpu.memory_space<vmem>>, vector<256x384xf32>
    %c0_1 = arith.constant 0 : index
    %c0_2 = arith.constant 0 : index
    %1 = vector.load %arg3[%c0_1, %c0_2] : memref<384x256xf32, #tpu.memory_space<vmem>>, vector<384x256xf32>
    %cst = arith.constant dense<0.000000e+00> : vector<256x256xf32>
    %2 = tpu.matmul %0, %1, %cst {dimension_numbers = #tpu.dot_dimension_numbers<[1], [0], [0], [1], [0, 0, 1, 1], [], []>} : vector<256x384xf32>, vector<384x256xf32>, vector<256x256xf32> -> vector<256x256xf32>
    %c0_3 = arith.constant 0 : index
    %c0_4 = arith.constant 0 : index
    %3 = vector.load %arg4[%c0_3, %c0_4] : memref<1x256xf32, #tpu.memory_space<vmem>>, vector<1x256xf32>
    %4 = vector.broadcast %3 : vector<1x256xf32> to vector<256x256xf32>
    %5 = arith.addf %2, %4 : vector<256x256xf32>
    %c0_5 = arith.constant 0 : index
    %c0_6 = arith.constant 0 : index
    %6 = vector.load %arg5[%c0_5, %c0_6] : memref<256x256xf32, #tpu.memory_space<vmem>>, vector<256x256xf32>
    tpu.vector_store %arg5[%c0_5, %c0_6], %5 {strides = array<i32>} : memref<256x256xf32, #tpu.memory_space<vmem>>, vector<256x256xf32>,
    return
  }
  func.func @transform_0(%arg0: i32, %arg1: i32) -> (i32, i32) {
    %c0_i32 = arith.constant 0 : i32
    %c0_i32_0 = arith.constant 0 : i32
    return %arg1, %c0_i32 : i32, i32
  }
  func.func @transform_1(%arg0: i32, %arg1: i32) -> (i32, i32) {
    %c0_i32 = arith.constant 0 : i32
    %c0_i32_0 = arith.constant 0 : i32
    return %c0_i32, %arg0 : i32, i32
  }
  func.func @transform_2(%arg0: i32, %arg1: i32) -> (i32, i32) {
    %c0_i32 = arith.constant 0 : i32
    %c0_i32_0 = arith.constant 0 : i32
    return %c0_i32, %arg0 : i32, i32
  }
  func.func @transform_3(%arg0: i32, %arg1: i32) -> (i32, i32) {
    %c0_i32 = arith.constant 0 : i32
    return %arg1, %arg0 : i32, i32
  }
}

</mosaic_0001>

<llo_original>
// kernel: sparse_input_linear.1
$region0: #{sparse_input_linear.1}
  #allocation0 [shape = 'u32[]', space=smem, size = 0x4, offset = 0x4, fixed_abs, tag = 'smem constant byte address 0x4 - core index']
  #allocation1 [shape = 'u32[72,128]{1,0:T(1,128)}', space=vmem, size = 0x9000, scoped, tag = 'internal scratch']
  %s0 = inlined_call_operand.hbm [shape: f32[256,384], index: 0, kind: input, shape index: {}]
  %s1 = inlined_call_operand.hbm [shape: f32[384,512], index: 1, kind: input, shape index: {}]
  %s2 = inlined_call_operand.hbm [shape: f32[1,512], index: 2, kind: input, shape index: {}]
  %s3 = inlined_call_operand.hbm [shape: f32[256,512], index: 3, kind: output, shape index: {}]
  %s4 = sld [smem:[#allocation0]]
  $region57: #{sparse_input_linear.1} parent=0
    _
  %s6 = ssub.s32 1, %s4
  %s7 = scalar_select 0, %s6, %s4
  $region1: #{sparse_input_linear.1} parent=0
    #allocation2 [shape = 'u8[393216]{0}', space=vmem, size = 0x60000, scoped, tag = 'input window, operand 0, single buffered']
    #allocation3 [shape = 's32[2]{0}', space=sflag, size = 0x8, scoped, tag = 'scoped memory for sparse_input_linear.1']
    #allocation4 [shape = 's32[2]{0}', space=sflag, size = 0x8, scoped, tag = 'scoped memory for sparse_input_linear.1']
    #allocation5 [shape = 'u8[786432]{0}', space=vmem, size = 0xc0000, scoped, tag = 'input window, operand 1']
    #allocation6 [shape = 's32[2]{0}', space=sflag, size = 0x8, scoped, tag = 'scoped memory for sparse_input_linear.1']
    #allocation7 [shape = 'u8[2048]{0}', space=vmem, size = 0x800, scoped, tag = 'input window, operand 2']
    #allocation8 [shape = 'u8[524288]{0}', space=vmem, size = 0x80000, scoped, tag = 'output window, operand 0']
    %8 = vsyncpa [#allocation3], 0
    %9 = vsyncpa [#allocation6], 0
    %s10 = scalar_lea.sflag [#allocation6], 1
    %11 = vsyncpa %s10, 0
    %12 = vsyncpa [#allocation4], 0
    %s13 = scalar_lea.sflag [#allocation4], 1
    %14 = vsyncpa %s13, 0
    loop: start=0, step=1, limit=4
    $region2: #{sparse_input_linear.1} parent=1 // loop_pre_header
      _
    $region3: #{sparse_input_linear.1} parent=1 // loop_header
      %s16 = sphi 0, %s20
      %p17 = scmp.ge.s32.totalorder %s16, 4
      %s23 = sphi 0, %s35
      %s24 = sphi 0, %s31
      %s25 = sphi 0, %s23
      %s26 = sphi 0, %s24
      %s27 = sphi 0, %s25
      %s28 = sphi 0, %s26
      %s38 = sphi 0, %s40
      %s41 = sphi 0, %s38
      %s42 = sphi 0, %s41
      %s58 = sphi 0, %s42
      %s64 = sphi 0, %s66
      %s67 = sphi 0, %s64
      %s68 = sphi 0, %s67
      %s84 = sphi 0, %s68
      %s90 = sphi 0, %s92
      %s93 = sphi 0, %s90
      %s94 = sphi 0, %s93
      %s110 = sphi 0, %s94
      %s118 = sphi 0, %s120
      %s121 = sphi 0, %s118
      %s122 = sphi 0, %s121
      %s138 = sphi 0, %s122
    $region4: #{sparse_input_linear.1} parent=1 // loop_header_branch
      %19 = sbr.rel (%p17) target = $region8
    $region5: #{sparse_input_linear.1} parent=1 // loop_body
      %s21 = ssub.s32 %s16, 1
      %s22 = ssub.s32 %s16, 2
      %s29 = sadd.s32 1, %s24
      %p30 = scmp.ge.s32.totalorder %s29, 1
      %s31 = scalar_select %p30, 0, %s29
      %s32 = sadd.s32 1, %s23
      %s33 = scalar_select %p30, %s32, %s23
      %p34 = scmp.ge.s32.totalorder %s33, 2
      %s35 = scalar_select %p34, 0, %s33
      %s36 = ssub.s32 %s24, %s31
      %p37 = scmp.eq.s32.totalorder %s36, 0
      %s39 = sadd.s32 %s38, 1
      %s40 = scalar_select %p37, %s38, %s39
      %p43 = pneg %p37
      %p44 = scmp.eq.s32.totalorder %s16, 1
      %p45 = por %p43, %p44
      %p46 = scmp.ne.s32.totalorder %s38, %s41
      %p47 = scmp.eq.s32.totalorder %s16, 0
      %p48 = por %p46, %p47
      %p49 = scmp.ne.s32.totalorder %s38, %s41
      %p50 = scmp.eq.s32.totalorder %s21, 1
      %p51 = por %p49, %p50
      %p52 = scmp.ne.s32.totalorder %s41, %s42
      %p53 = scmp.eq.s32.totalorder %s21, 0
      %p54 = por %p52, %p53
      %p55 = scmp.ne.s32.totalorder %s41, %s42
      %p56 = scmp.eq.s32.totalorder %s22, 1
      %p57 = por %p55, %p56
      %p59 = scmp.ne.s32.totalorder %s42, %s58
      %p60 = scmp.eq.s32.totalorder %s22, 0
      %p61 = por %p59, %p60
      %s62 = ssub.s32 %s23, %s35
      %p63 = scmp.eq.s32.totalorder %s62, 0
      %s65 = sadd.s32 %s64, 1
      %s66 = scalar_select %p63, %s64, %s65
      %p69 = pneg %p63
      %p70 = scmp.eq.s32.totalorder %s16, 1
      %p71 = por %p69, %p70
      %p72 = scmp.ne.s32.totalorder %s64, %s67
      %p73 = scmp.eq.s32.totalorder %s16, 0
      %p74 = por %p72, %p73
      %p75 = scmp.ne.s32.totalorder %s64, %s67
      %p76 = scmp.eq.s32.totalorder %s21, 1
      %p77 = por %p75, %p76
      %p78 = scmp.ne.s32.totalorder %s67, %s68
      %p79 = scmp.eq.s32.totalorder %s21, 0
      %p80 = por %p78, %p79
      %p81 = scmp.ne.s32.totalorder %s67, %s68
      %p82 = scmp.eq.s32.totalorder %s22, 1
      %p83 = por %p81, %p82
      %p85 = scmp.ne.s32.totalorder %s68, %s84
      %p86 = scmp.eq.s32.totalorder %s22, 0
      %p87 = por %p85, %p86
      %s88 = ssub.s32 %s23, %s35
      %p89 = scmp.eq.s32.totalorder %s88, 0
      %s91 = sadd.s32 %s90, 1
      %s92 = scalar_select %p89, %s90, %s91
      %p95 = pneg %p89
      %p96 = scmp.eq.s32.totalorder %s16, 1
      %p97 = por %p95, %p96
      %p98 = scmp.ne.s32.totalorder %s90, %s93
      %p99 = scmp.eq.s32.totalorder %s16, 0
      %p100 = por %p98, %p99
      %p101 = scmp.ne.s32.totalorder %s90, %s93
      %p102 = scmp.eq.s32.totalorder %s21, 1
      %p103 = por %p101, %p102
      %p104 = scmp.ne.s32.totalorder %s93, %s94
      %p105 = scmp.eq.s32.totalorder %s21, 0
      %p106 = por %p104, %p105
      %p107 = scmp.ne.s32.totalorder %s93, %s94
      %p108 = scmp.eq.s32.totalorder %s22, 1
      %p109 = por %p107, %p108
      %p111 = scmp.ne.s32.totalorder %s94, %s110
      %p112 = scmp.eq.s32.totalorder %s22, 0
      %p113 = por %p111, %p112
      %s114 = ssub.s32 %s24, %s31
      %s115 = ssub.s32 %s23, %s35
      %s116 = sor.u32 %s114, %s115
      %p117 = scmp.eq.s32.totalorder %s116, 0
      %s119 = sadd.s32 %s118, 1
      %s120 = scalar_select %p117, %s118, %s119
      %p123 = pneg %p117
      %p124 = scmp.eq.s32.totalorder %s16, 1
      %p125 = por %p123, %p124
      %p126 = scmp.ne.s32.totalorder %s118, %s121
      %p127 = scmp.eq.s32.totalorder %s16, 0
      %p128 = por %p126, %p127
      %p129 = scmp.ne.s32.totalorder %s118, %s121
      %p130 = scmp.eq.s32.totalorder %s21, 1
      %p131 = por %p129, %p130
      %p132 = scmp.ne.s32.totalorder %s121, %s122
      %p133 = scmp.eq.s32.totalorder %s21, 0
      %p134 = por %p132, %p133
      %p135 = scmp.ne.s32.totalorder %s121, %s122
      %p136 = scmp.eq.s32.totalorder %s22, 1
      %p137 = por %p135, %p136
      %p139 = scmp.ne.s32.totalorder %s122, %s138
      %p140 = scmp.eq.s32.totalorder %s22, 0
      %p141 = por %p139, %p140
      %p142 = scmp.le.s32.totalorder 1, %s16
      %p143 = scmp.lt.s32.totalorder %s16, 3
      %p144 = pnand %p142, %p143
      %p145 = pneg %p144
      // Predicated region
      $region9: #{sparse_input_linear.1} parent=5 // pred_check
        _
      $region10: #{sparse_input_linear.1} parent=5 // pred_check_branch
        %147 = sbr.rel (%p144) target = $region12
      $region11: #{sparse_input_linear.1} parent=5 // pred_region
        %s148 = ssub.s32 %s16, 1
        // Predicated region
        $region13: #{sparse_input_linear.1} parent=11 // pred_check
          %p149 = pneg %p54
        $region14: #{sparse_input_linear.1} parent=11 // pred_check_branch
          %151 = sbr.rel (%p149) target = $region16
        $region15: #{sparse_input_linear.1} parent=11 // pred_region
          %s152 = smul.u32 32, %s26
          %154 = vsyncadd [#allocation3], 0
          %s155 = smul.addr %s152, 3
          %s156 = smul.addr %s155, 8
          %s157 = scalar_lea.hbm %s0, %s156
          %s158 = sshll.u32 %s157, 4
          %s159 = int_to_ptr.hbm [resolvable:$true] %s158
          %s160 = sshll.u32 [#allocation2], 4
          %s161 = int_to_ptr.vmem [resolvable:$true] %s160
          %166 = dma.hbm_to_vmem [thread:$0]  %s159, 12288, %s161, [#allocation3], 384, 384, 24
        $region16: #{sparse_input_linear.1} parent=11 // pred_fallthru
          _
      $region12: #{sparse_input_linear.1} parent=5 // pred_fallthru
        _
      %p167 = scmp.lt.s32.totalorder %s16, 2
      // Predicated region
      $region17: #{sparse_input_linear.1} parent=5 // pred_check
        %p168 = pneg %p167
      $region18: #{sparse_input_linear.1} parent=5 // pred_check_branch
        %170 = sbr.rel (%p168) target = $region20
      $region19: #{sparse_input_linear.1} parent=5 // pred_region
        // Predicated region
        $region21: #{sparse_input_linear.1} parent=19 // pred_check
          %p171 = pneg %p74
        $region22: #{sparse_input_linear.1} parent=19 // pred_check_branch
          %173 = sbr.rel (%p171) target = $region24
        $region23: #{sparse_input_linear.1} parent=19 // pred_region
          %s174 = sand.u32 %s16, 1
          %s175 = scalar_lea.sflag [#allocation6], %s174
          %s176 = sand.u32 %s64, 1
          %s177 = smul.addr %s176, 768
          %s178 = scalar_lea.vmem [#allocation5], %s177
          %s179 = smul.u32 2, %s23
          %181 = vsyncadd %s175, 0
          %s182 = smul.addr %s179, 8
          %s183 = scalar_lea.hbm %s1, %s182
          %s184 = sshll.u32 %s183, 4
          %s185 = int_to_ptr.hbm [resolvable:$true] %s184
          %s186 = sshll.u32 %s178, 4
          %s187 = int_to_ptr.vmem [resolvable:$true] %s186
          %192 = dma.hbm_to_vmem [thread:$0]  %s185, 12288, %s187, %s175, 512, 256, 16
        $region24: #{sparse_input_linear.1} parent=19 // pred_fallthru
          _
        // Predicated region
        $region25: #{sparse_input_linear.1} parent=19 // pred_check
          %p193 = pneg %p100
        $region26: #{sparse_input_linear.1} parent=19 // pred_check_branch
          %195 = sbr.rel (%p193) target = $region28
        $region27: #{sparse_input_linear.1} parent=19 // pred_region
          %s196 = sand.u32 %s16, 1
          %s197 = scalar_lea.sflag [#allocation6], %s196
          %s198 = sand.u32 %s90, 1
          %s199 = smul.addr %s198, 2
          %s200 = scalar_lea.vmem [#allocation7], %s199
          %s201 = smul.u32 2, %s23
          %203 = vsyncadd %s197, 0
          %s204 = scalar_lea.hbm %s2, %s201
          %s206 = sshll.u32 %s204, 4
          %s207 = int_to_ptr.hbm [resolvable:$true] %s206
          %s208 = sshll.u32 %s200, 4
          %s209 = int_to_ptr.vmem [resolvable:$true] %s208
          %211 = dma.hbm_to_vmem [thread:$0]  %s207, 32, %s209, %s197
        $region28: #{sparse_input_linear.1} parent=19 // pred_fallthru
          _
      $region20: #{sparse_input_linear.1} parent=5 // pred_fallthru
        _
      %p212 = scmp.le.s32.totalorder 1, %s16
      %p213 = scmp.lt.s32.totalorder %s16, 3
      %p214 = pnand %p212, %p213
      %p215 = pneg %p214
      // Predicated region
      $region29: #{sparse_input_linear.1} parent=5 // pred_check
        _
      $region30: #{sparse_input_linear.1} parent=5 // pred_check_branch
        %217 = sbr.rel (%p214) target = $region32
      $region31: #{sparse_input_linear.1} parent=5 // pred_region
        %s218 = ssub.s32 %s16, 1
        // Predicated region
        $region33: #{sparse_input_linear.1} parent=31 // pred_check
          %p219 = pneg %p54
        $region34: #{sparse_input_linear.1} parent=31 // pred_check_branch
          %221 = sbr.rel (%p219) target = $region36
        $region35: #{sparse_input_linear.1} parent=31 // pred_region
          %223 = dma.done [#allocation3], 12288
        $region36: #{sparse_input_linear.1} parent=31 // pred_fallthru
          _
        %s224 = sand.u32 %s21, 1
        %s225 = scalar_lea.sflag [#allocation6], %s224
        %s226 = sand.u32 %s67, 1
        %s227 = smul.addr %s226, 768
        %s228 = scalar_lea.vmem [#allocation5], %s227
        // Predicated region
        $region37: #{sparse_input_linear.1} parent=31 // pred_check
          %p229 = pneg %p80
        $region38: #{sparse_input_linear.1} parent=31 // pred_check_branch
          %231 = sbr.rel (%p229) target = $region40
        $region39: #{sparse_input_linear.1} parent=31 // pred_region
          %233 = dma.done %s225, 12288
        $region40: #{sparse_input_linear.1} parent=31 // pred_fallthru
          _
        %s234 = sand.u32 %s21, 1
        %s235 = scalar_lea.sflag [#allocation6], %s234
        %s236 = sand.u32 %s93, 1
        %s237 = smul.addr %s236, 2
        %s238 = scalar_lea.vmem [#allocation7], %s237
        // Predicated region
        $region41: #{sparse_input_linear.1} parent=31 // pred_check
          %p239 = pneg %p106
        $region42: #{sparse_input_linear.1} parent=31 // pred_check_branch
          %241 = sbr.rel (%p239) target = $region44
        $region43: #{sparse_input_linear.1} parent=31 // pred_region
          %243 = dma.done %s235, 32
        $region44: #{sparse_input_linear.1} parent=31 // pred_fallthru
          _
        %p244 = pneg %p54
        %p245 = pneg %p51
        %s246 = sand.u32 %s21, 1
        %s247 = scalar_lea.sflag [#allocation6], %s246
        %s248 = sand.u32 %s67, 1
        %s249 = smul.addr %s248, 768
        %s250 = scalar_lea.vmem [#allocation5], %s249
        %p251 = pneg %p80
        %p252 = pneg %p77
        %s253 = sand.u32 %s21, 1
        %s254 = scalar_lea.sflag [#allocation6], %s253
        %s255 = sand.u32 %s93, 1
        %s256 = smul.addr %s255, 2
        %s257 = scalar_lea.vmem [#allocation7], %s256
        %p258 = pneg %p106
        %p259 = pneg %p103
        %p260 = pneg %p134
        %p261 = pneg %p131
        %s262 = sand.u32 %s121, 1
        %s263 = scalar_lea.sflag [#allocation4], %s262
        %s264 = sand.u32 %s121, 1
        %s265 = smul.addr %s264, 512
        %s266 = scalar_lea.vmem [#allocation8], %s265
        %s267 = smul.u32 32, %s26
        %s268 = smul.u32 2, %s25
        %s269 = smul.u32 2, %s25
        %s270 = smul.u32 32, %s26
        %s271 = smul.u32 2, %s25
        %v272 = vld [vmem:[#allocation2] sm:$0xff]
        %v273 = vld [vmem:[#allocation2 + $0x8] sm:$0xff]
        %v274 = vld [vmem:[#allocation2 + $0x10] sm:$0xff]
        %v275 = vld [vmem:[#allocation2 + $0x18] sm:$0xff]
        %v276 = vld [vmem:[#allocation2 + $0x20] sm:$0xff]
        %v277 = vld [vmem:[#allocation2 + $0x28] sm:$0xff]
        %v278 = vld [vmem:[#allocation2 + $0x30] sm:$0xff]
        %v279 = vld [vmem:[#allocation2 + $0x38] sm:$0xff]
        %v280 = vld [vmem:[#allocation2 + $0x40] sm:$0xff]
        %v281 = vld [vmem:[#allocation2 + $0x48] sm:$0xff]
        %v282 = vld [vmem:[#allocation2 + $0x50] sm:$0xff]
        %v283 = vld [vmem:[#allocation2 + $0x58] sm:$0xff]
        %v284 = vld [vmem:[#allocation2 + $0x60] sm:$0xff]
        %v285 = vld [vmem:[#allocation2 + $0x68] sm:$0xff]
        %v286 = vld [vmem:[#allocation2 + $0x70] sm:$0xff]
        %v287 = vld [vmem:[#allocation2 + $0x78] sm:$0xff]
        %v288 = vld [vmem:[#allocation2 + $0x80] sm:$0xff]
        %v289 = vld [vmem:[#allocation2 + $0x88] sm:$0xff]
        %v290 = vld [vmem:[#allocation2 + $0x90] sm:$0xff]
        %v291 = vld [vmem:[#allocation2 + $0x98] sm:$0xff]
        %v292 = vld [vmem:[#allocation2 + $0xa0] sm:$0xff]
        %v293 = vld [vmem:[#allocation2 + $0xa8] sm:$0xff]
        %v294 = vld [vmem:[#allocation2 + $0xb0] sm:$0xff]
        %v295 = vld [vmem:[#allocation2 + $0xb8] sm:$0xff]
        %v296 = vld [vmem:[#allocation2 + $0xc0] sm:$0xff]
        %v297 = vld [vmem:[#allocation2 + $0xc8] sm:$0xff]
        %v298 = vld [vmem:[#allocation2 + $0xd0] sm:$0xff]
        %v299 = vld [vmem:[#allocation2 + $0xd8] sm:$0xff]
        %v300 = vld [vmem:[#allocation2 + $0xe0] sm:$0xff]
        %v301 = vld [vmem:[#allocation2 + $0xe8] sm:$0xff]
        %v302 = vld [vmem:[#allocation2 + $0xf0] sm:$0xff]
        %v303 = vld [vmem:[#allocation2 + $0xf8] sm:$0xff]
        %v304 = vld [vmem:[#allocation2 + $0x100] sm:$0xff]
        %v305 = vld [vmem:[#allocation2 + $0x108] sm:$0xff]
        %v306 = vld [vmem:[#allocation2 + $0x110] sm:$0xff]
        %v307 = vld [vmem:[#allocation2 + $0x118] sm:$0xff]
        %v308 = vld [vmem:[#allocation2 + $0x120] sm:$0xff]
        %v309 = vld [vmem:[#allocation2 + $0x128] sm:$0xff]
        %v310 = vld [vmem:[#allocation2 + $0x130] sm:$0xff]
        %v311 = vld [vmem:[#allocation2 + $0x138] sm:$0xff]
        %v312 = vld [vmem:[#allocation2 + $0x140] sm:$0xff]
        %v313 = vld [vmem:[#allocation2 + $0x148] sm:$0xff]
        %v314 = vld [vmem:[#allocation2 + $0x150] sm:$0xff]
        %v315 = vld [vmem:[#allocation2 + $0x158] sm:$0xff]
        %v316 = vld [vmem:[#allocation2 + $0x160] sm:$0xff]
        %v317 = vld [vmem:[#allocation2 + $0x168] sm:$0xff]
        %v318 = vld [vmem:[#allocation2 + $0x170] sm:$0xff]
        %v319 = vld [vmem:[#allocation2 + $0x178] sm:$0xff]
        %v320 = vld [vmem:[#allocation2 + $0x180] sm:$0xff]
        %v321 = vld [vmem:[#allocation2 + $0x188] sm:$0xff]
        %v322 = vld [vmem:[#allocation2 + $0x190] sm:$0xff]
        %v323 = vld [vmem:[#allocation2 + $0x198] sm:$0xff]
        %v324 = vld [vmem:[#allocation2 + $0x1a0] sm:$0xff]
        %v325 = vld [vmem:[#allocation2 + $0x1a8] sm:$0xff]
        %v326 = vld [vmem:[#allocation2 + $0x1b0] sm:$0xff]
        %v327 = vld [vmem:[#allocation2 + $0x1b8] sm:$0xff]
        %v328 = vld [vmem:[#allocation2 + $0x1c0] sm:$0xff]
        %v329 = vld [vmem:[#allocation2 + $0x1c8] sm:$0xff]
        %v330 = vld [vmem:[#allocation2 + $0x1d0] sm:$0xff]
        %v331 = vld [vmem:[#allocation2 + $0x1d8] sm:$0xff]
        %v332 = vld [vmem:[#allocation2 + $0x1e0] sm:$0xff]
        %v333 = vld [vmem:[#allocation2 + $0x1e8] sm:$0xff]
        %v334 = vld [vmem:[#allocation2 + $0x1f0] sm:$0xff]
        %v335 = vld [vmem:[#allocation2 + $0x1f8] sm:$0xff]
        %v336 = vld [vmem:[#allocation2 + $0x200] sm:$0xff]
        %v337 = vld [vmem:[#allocation2 + $0x208] sm:$0xff]
        %v338 = vld [vmem:[#allocation2 + $0x210] sm:$0xff]
        %v339 = vld [vmem:[#allocation2 + $0x218] sm:$0xff]
        %v340 = vld [vmem:[#allocation2 + $0x220] sm:$0xff]
        %v341 = vld [vmem:[#allocation2 + $0x228] sm:$0xff]
        %v342 = vld [vmem:[#allocation2 + $0x230] sm:$0xff]
        %v343 = vld [vmem:[#allocation2 + $0x238] sm:$0xff]
        %v344 = vld [vmem:[#allocation2 + $0x240] sm:$0xff]
        %v345 = vld [vmem:[#allocation2 + $0x248] sm:$0xff]
        %v346 = vld [vmem:[#allocation2 + $0x250] sm:$0xff]
        %v347 = vld [vmem:[#allocation2 + $0x258] sm:$0xff]
        %v348 = vld [vmem:[#allocation2 + $0x260] sm:$0xff]
        %v349 = vld [vmem:[#allocation2 + $0x268] sm:$0xff]
        %v350 = vld [vmem:[#allocation2 + $0x270] sm:$0xff]
        %v351 = vld [vmem:[#allocation2 + $0x278] sm:$0xff]
        %v352 = vld [vmem:[#allocation2 + $0x280] sm:$0xff]
        %v353 = vld [vmem:[#allocation2 + $0x288] sm:$0xff]
        %v354 = vld [vmem:[#allocation2 + $0x290] sm:$0xff]
        %v355 = vld [vmem:[#allocation2 + $0x298] sm:$0xff]
        %v356 = vld [vmem:[#allocation2 + $0x2a0] sm:$0xff]
        %v357 = vld [vmem:[#allocation2 + $0x2a8] sm:$0xff]
        %v358 = vld [vmem:[#allocation2 + $0x2b0] sm:$0xff]
        %v359 = vld [vmem:[#allocation2 + $0x2b8] sm:$0xff]
        %v360 = vld [vmem:[#allocation2 + $0x2c0] sm:$0xff]
        %v361 = vld [vmem:[#allocation2 + $0x2c8] sm:$0xff]
        %v362 = vld [vmem:[#allocation2 + $0x2d0] sm:$0xff]
        %v363 = vld [vmem:[#allocation2 + $0x2d8] sm:$0xff]
        %v364 = vld [vmem:[#allocation2 + $0x2e0] sm:$0xff]
        %v365 = vld [vmem:[#allocation2 + $0x2e8] sm:$0xff]
        %v366 = vld [vmem:[#allocation2 + $0x2f0] sm:$0xff]
        %v367 = vld [vmem:[#allocation2 + $0x2f8] sm:$0xff]
        %v368 = vld [vmem:[%s228] sm:$0xff]
        %v369 = vld [vmem:[%s228 + $0x8] sm:$0xff]
        %v370 = vld [vmem:[%s228 + $0x10] sm:$0xff]
        %v371 = vld [vmem:[%s228 + $0x18] sm:$0xff]
        %v372 = vld [vmem:[%s228 + $0x20] sm:$0xff]
        %v373 = vld [vmem:[%s228 + $0x28] sm:$0xff]
        %v374 = vld [vmem:[%s228 + $0x30] sm:$0xff]
        %v375 = vld [vmem:[%s228 + $0x38] sm:$0xff]
        %v376 = vld [vmem:[%s228 + $0x40] sm:$0xff]
        %v377 = vld [vmem:[%s228 + $0x48] sm:$0xff]
        %v378 = vld [vmem:[%s228 + $0x50] sm:$0xff]
        %v379 = vld [vmem:[%s228 + $0x58] sm:$0xff]
        %v380 = vld [vmem:[%s228 + $0x60] sm:$0xff]
        %v381 = vld [vmem:[%s228 + $0x68] sm:$0xff]
        %v382 = vld [vmem:[%s228 + $0x70] sm:$0xff]
        %v383 = vld [vmem:[%s228 + $0x78] sm:$0xff]
        %v384 = vld [vmem:[%s228 + $0x80] sm:$0xff]
        %v385 = vld [vmem:[%s228 + $0x88] sm:$0xff]
        %v386 = vld [vmem:[%s228 + $0x90] sm:$0xff]
        %v387 = vld [vmem:[%s228 + $0x98] sm:$0xff]
        %v388 = vld [vmem:[%s228 + $0xa0] sm:$0xff]
        %v389 = vld [vmem:[%s228 + $0xa8] sm:$0xff]
        %v390 = vld [vmem:[%s228 + $0xb0] sm:$0xff]
        %v391 = vld [vmem:[%s228 + $0xb8] sm:$0xff]
        %v392 = vld [vmem:[%s228 + $0xc0] sm:$0xff]
        %v393 = vld [vmem:[%s228 + $0xc8] sm:$0xff]
        %v394 = vld [vmem:[%s228 + $0xd0] sm:$0xff]
        %v395 = vld [vmem:[%s228 + $0xd8] sm:$0xff]
        %v396 = vld [vmem:[%s228 + $0xe0] sm:$0xff]
        %v397 = vld [vmem:[%s228 + $0xe8] sm:$0xff]
        %v398 = vld [vmem:[%s228 + $0xf0] sm:$0xff]
        %v399 = vld [vmem:[%s228 + $0xf8] sm:$0xff]
        %v400 = vld [vmem:[%s228 + $0x100] sm:$0xff]
        %v401 = vld [vmem:[%s228 + $0x108] sm:$0xff]
        %v402 = vld [vmem:[%s228 + $0x110] sm:$0xff]
        %v403 = vld [vmem:[%s228 + $0x118] sm:$0xff]
        %v404 = vld [vmem:[%s228 + $0x120] sm:$0xff]
        %v405 = vld [vmem:[%s228 + $0x128] sm:$0xff]
        %v406 = vld [vmem:[%s228 + $0x130] sm:$0xff]
        %v407 = vld [vmem:[%s228 + $0x138] sm:$0xff]
        %v408 = vld [vmem:[%s228 + $0x140] sm:$0xff]
        %v409 = vld [vmem:[%s228 + $0x148] sm:$0xff]
        %v410 = vld [vmem:[%s228 + $0x150] sm:$0xff]
        %v411 = vld [vmem:[%s228 + $0x158] sm:$0xff]
        %v412 = vld [vmem:[%s228 + $0x160] sm:$0xff]
        %v413 = vld [vmem:[%s228 + $0x168] sm:$0xff]
        %v414 = vld [vmem:[%s228 + $0x170] sm:$0xff]
        %v415 = vld [vmem:[%s228 + $0x178] sm:$0xff]
        %v416 = vld [vmem:[%s228 + $0x180] sm:$0xff]
        %v417 = vld [vmem:[%s228 + $0x188] sm:$0xff]
        %v418 = vld [vmem:[%s228 + $0x190] sm:$0xff]
        %v419 = vld [vmem:[%s228 + $0x198] sm:$0xff]
        %v420 = vld [vmem:[%s228 + $0x1a0] sm:$0xff]
        %v421 = vld [vmem:[%s228 + $0x1a8] sm:$0xff]
        %v422 = vld [vmem:[%s228 + $0x1b0] sm:$0xff]
        %v423 = vld [vmem:[%s228 + $0x1b8] sm:$0xff]
        %v424 = vld [vmem:[%s228 + $0x1c0] sm:$0xff]
        %v425 = vld [vmem:[%s228 + $0x1c8] sm:$0xff]
        %v426 = vld [vmem:[%s228 + $0x1d0] sm:$0xff]
        %v427 = vld [vmem:[%s228 + $0x1d8] sm:$0xff]
        %v428 = vld [vmem:[%s228 + $0x1e0] sm:$0xff]
        %v429 = vld [vmem:[%s228 + $0x1e8] sm:$0xff]
        %v430 = vld [vmem:[%s228 + $0x1f0] sm:$0xff]
        %v431 = vld [vmem:[%s228 + $0x1f8] sm:$0xff]
        %v432 = vld [vmem:[%s228 + $0x200] sm:$0xff]
        %v433 = vld [vmem:[%s228 + $0x208] sm:$0xff]
        %v434 = vld [vmem:[%s228 + $0x210] sm:$0xff]
        %v435 = vld [vmem:[%s228 + $0x218] sm:$0xff]
        %v436 = vld [vmem:[%s228 + $0x220] sm:$0xff]
        %v437 = vld [vmem:[%s228 + $0x228] sm:$0xff]
        %v438 = vld [vmem:[%s228 + $0x230] sm:$0xff]
        %v439 = vld [vmem:[%s228 + $0x238] sm:$0xff]
        %v440 = vld [vmem:[%s228 + $0x240] sm:$0xff]
        %v441 = vld [vmem:[%s228 + $0x248] sm:$0xff]
        %v442 = vld [vmem:[%s228 + $0x250] sm:$0xff]
        %v443 = vld [vmem:[%s228 + $0x258] sm:$0xff]
        %v444 = vld [vmem:[%s228 + $0x260] sm:$0xff]
        %v445 = vld [vmem:[%s228 + $0x268] sm:$0xff]
        %v446 = vld [vmem:[%s228 + $0x270] sm:$0xff]
        %v447 = vld [vmem:[%s228 + $0x278] sm:$0xff]
        %v448 = vld [vmem:[%s228 + $0x280] sm:$0xff]
        %v449 = vld [vmem:[%s228 + $0x288] sm:$0xff]
        %v450 = vld [vmem:[%s228 + $0x290] sm:$0xff]
        %v451 = vld [vmem:[%s228 + $0x298] sm:$0xff]
        %v452 = vld [vmem:[%s228 + $0x2a0] sm:$0xff]
        %v453 = vld [vmem:[%s228 + $0x2a8] sm:$0xff]
        %v454 = vld [vmem:[%s228 + $0x2b0] sm:$0xff]
        %v455 = vld [vmem:[%s228 + $0x2b8] sm:$0xff]
        %v456 = vld [vmem:[%s228 + $0x2c0] sm:$0xff]
        %v457 = vld [vmem:[%s228 + $0x2c8] sm:$0xff]
        %v458 = vld [vmem:[%s228 + $0x2d0] sm:$0xff]
        %v459 = vld [vmem:[%s228 + $0x2d8] sm:$0xff]
        %v460 = vld [vmem:[%s228 + $0x2e0] sm:$0xff]
        %v461 = vld [vmem:[%s228 + $0x2e8] sm:$0xff]
        %v462 = vld [vmem:[%s228 + $0x2f0] sm:$0xff]
        %v463 = vld [vmem:[%s228 + $0x2f8] sm:$0xff]
        %v464 = vld [vmem:[%s238] sm:$0x3]
        %v466 = vperm.slane %v464, 0
        %v467 = vperm.slane %v464, 1
        %470 = vmatpush.msra.mxu0 %v398
        %471 = vmatpush.msra.mxu0 %v396
        %472 = vmatpush.msra.mxu0 %v394
        %473 = vmatpush.msra.mxu0 %v392
        %474 = vmatpush.msra.mxu0 %v390
        %475 = vmatpush.msra.mxu0 %v388
        %476 = vmatpush.msra.mxu0 %v386
        %477 = vmatpush.msra.mxu0 %v384
        %478 = vmatpush.msra.mxu0 %v382
        %479 = vmatpush.msra.mxu0 %v380
        %480 = vmatpush.msra.mxu0 %v378
        %481 = vmatpush.msra.mxu0 %v376
        %482 = vmatpush.msra.mxu0 %v374
        %483 = vmatpush.msra.mxu0 %v372
        %484 = vmatpush.msra.mxu0 %v370
        %485 = vmatpush.msra.mxu0 %v368
        %486 = vmatmul.f32.gmra.mxu0 %v272
        %v487 = vpop.f32.mrf.mxu0
        %v488 = vadd.f32 %v466, %v487
        %489 = vmatmul.f32.gmra.mxu0 %v275
        %v490 = vpop.f32.mrf.mxu0
        %v491 = vadd.f32 %v466, %v490
        %492 = vmatmul.f32.gmra.mxu0 %v278
        %v493 = vpop.f32.mrf.mxu0
        %v494 = vadd.f32 %v466, %v493
        %495 = vmatmul.f32.gmra.mxu0 %v281
        %v496 = vpop.f32.mrf.mxu0
        %v497 = vadd.f32 %v466, %v496
        %498 = vmatmul.f32.gmra.mxu0 %v284
        %v499 = vpop.f32.mrf.mxu0
        %v500 = vadd.f32 %v466, %v499
        %501 = vmatmul.f32.gmra.mxu0 %v287
        %v502 = vpop.f32.mrf.mxu0
        %v503 = vadd.f32 %v466, %v502
        %504 = vmatmul.f32.gmra.mxu0 %v290
        %v505 = vpop.f32.mrf.mxu0
        %v506 = vadd.f32 %v466, %v505
        %507 = vmatmul.f32.gmra.mxu0 %v293
        %v508 = vpop.f32.mrf.mxu0
        %v509 = vadd.f32 %v466, %v508
        %510 = vmatmul.f32.gmra.mxu0 %v296
        %v511 = vpop.f32.mrf.mxu0
        %v512 = vadd.f32 %v466, %v511
        %513 = vmatmul.f32.gmra.mxu0 %v299
        %v514 = vpop.f32.mrf.mxu0
        %v515 = vadd.f32 %v466, %v514
        %516 = vmatmul.f32.gmra.mxu0 %v302
        %v517 = vpop.f32.mrf.mxu0
        %v518 = vadd.f32 %v466, %v517
        %519 = vmatmul.f32.gmra.mxu0 %v305
        %v520 = vpop.f32.mrf.mxu0
        %v521 = vadd.f32 %v466, %v520
        %522 = vmatmul.f32.gmra.mxu0 %v308
        %v523 = vpop.f32.mrf.mxu0
        %v524 = vadd.f32 %v466, %v523
        %525 = vmatmul.f32.gmra.mxu0 %v311
        %v526 = vpop.f32.mrf.mxu0
        %v527 = vadd.f32 %v466, %v526
        %528 = vmatmul.f32.gmra.mxu0 %v314
        %v529 = vpop.f32.mrf.mxu0
        %v530 = vadd.f32 %v466, %v529
        %531 = vmatmul.f32.gmra.mxu0 %v317
        %v532 = vpop.f32.mrf.mxu0
        %v533 = vadd.f32 %v466, %v532
        %534 = vmatmul.f32.gmra.mxu0 %v320
        %v535 = vpop.f32.mrf.mxu0
        %v536 = vadd.f32 %v466, %v535
        %537 = vmatmul.f32.gmra.mxu0 %v323
        %v538 = vpop.f32.mrf.mxu0
        %v539 = vadd.f32 %v466, %v538
        %540 = vmatmul.f32.gmra.mxu0 %v326
        %v541 = vpop.f32.mrf.mxu0
        %v542 = vadd.f32 %v466, %v541
        %543 = vmatmul.f32.gmra.mxu0 %v329
        %v544 = vpop.f32.mrf.mxu0
        %v545 = vadd.f32 %v466, %v544
        %546 = vmatmul.f32.gmra.mxu0 %v332
        %v547 = vpop.f32.mrf.mxu0
        %v548 = vadd.f32 %v466, %v547
        %549 = vmatmul.f32.gmra.mxu0 %v335
        %v550 = vpop.f32.mrf.mxu0
        %v551 = vadd.f32 %v466, %v550
        %552 = vmatmul.f32.gmra.mxu0 %v338
        %v553 = vpop.f32.mrf.mxu0
        %v554 = vadd.f32 %v466, %v553
        %555 = vmatmul.f32.gmra.mxu0 %v341
        %v556 = vpop.f32.mrf.mxu0
        %v557 = vadd.f32 %v466, %v556
        %558 = vmatmul.f32.gmra.mxu0 %v344
        %v559 = vpop.f32.mrf.mxu0
        %v560 = vadd.f32 %v466, %v559
        %561 = vmatmul.f32.gmra.mxu0 %v347
        %v562 = vpop.f32.mrf.mxu0
        %v563 = vadd.f32 %v466, %v562
        %564 = vmatmul.f32.gmra.mxu0 %v350
        %v565 = vpop.f32.mrf.mxu0
        %v566 = vadd.f32 %v466, %v565
        %567 = vmatmul.f32.gmra.mxu0 %v353
        %v568 = vpop.f32.mrf.mxu0
        %v569 = vadd.f32 %v466, %v568
        %570 = vmatmul.f32.gmra.mxu0 %v356
        %v571 = vpop.f32.mrf.mxu0
        %v572 = vadd.f32 %v466, %v571
        %573 = vmatmul.f32.gmra.mxu0 %v359
        %v574 = vpop.f32.mrf.mxu0
        %v575 = vadd.f32 %v466, %v574
        %576 = vmatmul.f32.gmra.mxu0 %v362
        %v577 = vpop.f32.mrf.mxu0
        %v578 = vadd.f32 %v466, %v577
        %579 = vmatmul.f32.gmra.mxu0 %v365
        %v580 = vpop.f32.mrf.mxu0
        %v581 = vadd.f32 %v466, %v580
        %582 = vdwg.mxu0
        %583 = vmatpush.msra.mxu0 %v430
        %584 = vmatpush.msra.mxu0 %v428
        %585 = vmatpush.msra.mxu0 %v426
        %586 = vmatpush.msra.mxu0 %v424
        %587 = vmatpush.msra.mxu0 %v422
        %588 = vmatpush.msra.mxu0 %v420
        %589 = vmatpush.msra.mxu0 %v418
        %590 = vmatpush.msra.mxu0 %v416
        %591 = vmatpush.msra.mxu0 %v414
        %592 = vmatpush.msra.mxu0 %v412
        %593 = vmatpush.msra.mxu0 %v410
        %594 = vmatpush.msra.mxu0 %v408
        %595 = vmatpush.msra.mxu0 %v406
        %596 = vmatpush.msra.mxu0 %v404
        %597 = vmatpush.msra.mxu0 %v402
        %598 = vmatpush.msra.mxu0 %v400
        %599 = vmatmul.f32.gmra.mxu0 %v273
        %v600 = vpop.f32.mrf.mxu0
        %v601 = vadd.f32 %v488, %v600
        %602 = vmatmul.f32.gmra.mxu0 %v276
        %v603 = vpop.f32.mrf.mxu0
        %v604 = vadd.f32 %v491, %v603
        %605 = vmatmul.f32.gmra.mxu0 %v279
        %v606 = vpop.f32.mrf.mxu0
        %v607 = vadd.f32 %v494, %v606
        %608 = vmatmul.f32.gmra.mxu0 %v282
        %v609 = vpop.f32.mrf.mxu0
        %v610 = vadd.f32 %v497, %v609
        %611 = vmatmul.f32.gmra.mxu0 %v285
        %v612 = vpop.f32.mrf.mxu0
        %v613 = vadd.f32 %v500, %v612
        %614 = vmatmul.f32.gmra.mxu0 %v288
        %v615 = vpop.f32.mrf.mxu0
        %v616 = vadd.f32 %v503, %v615
        %617 = vmatmul.f32.gmra.mxu0 %v291
        %v618 = vpop.f32.mrf.mxu0
        %v619 = vadd.f32 %v506, %v618
        %620 = vmatmul.f32.gmra.mxu0 %v294
        %v621 = vpop.f32.mrf.mxu0
        %v622 = vadd.f32 %v509, %v621
        %623 = vmatmul.f32.gmra.mxu0 %v297
        %v624 = vpop.f32.mrf.mxu0
        %v625 = vadd.f32 %v512, %v624
        %626 = vmatmul.f32.gmra.mxu0 %v300
        %v627 = vpop.f32.mrf.mxu0
        %v628 = vadd.f32 %v515, %v627
        %629 = vmatmul.f32.gmra.mxu0 %v303
        %v630 = vpop.f32.mrf.mxu0
        %v631 = vadd.f32 %v518, %v630
        %632 = vmatmul.f32.gmra.mxu0 %v306
        %v633 = vpop.f32.mrf.mxu0
        %v634 = vadd.f32 %v521, %v633
        %635 = vmatmul.f32.gmra.mxu0 %v309
        %v636 = vpop.f32.mrf.mxu0
        %v637 = vadd.f32 %v524, %v636
        %638 = vmatmul.f32.gmra.mxu0 %v312
        %v639 = vpop.f32.mrf.mxu0
        %v640 = vadd.f32 %v527, %v639
        %641 = vmatmul.f32.gmra.mxu0 %v315
        %v642 = vpop.f32.mrf.mxu0
        %v643 = vadd.f32 %v530, %v642
        %644 = vmatmul.f32.gmra.mxu0 %v318
        %v645 = vpop.f32.mrf.mxu0
        %v646 = vadd.f32 %v533, %v645
        %647 = vmatmul.f32.gmra.mxu0 %v321
        %v648 = vpop.f32.mrf.mxu0
        %v649 = vadd.f32 %v536, %v648
        %650 = vmatmul.f32.gmra.mxu0 %v324
        %v651 = vpop.f32.mrf.mxu0
        %v652 = vadd.f32 %v539, %v651
        %653 = vmatmul.f32.gmra.mxu0 %v327
        %v654 = vpop.f32.mrf.mxu0
        %v655 = vadd.f32 %v542, %v654
        %656 = vmatmul.f32.gmra.mxu0 %v330
        %v657 = vpop.f32.mrf.mxu0
        %v658 = vadd.f32 %v545, %v657
        %659 = vmatmul.f32.gmra.mxu0 %v333
        %v660 = vpop.f32.mrf.mxu0
        %v661 = vadd.f32 %v548, %v660
        %662 = vmatmul.f32.gmra.mxu0 %v336
        %v663 = vpop.f32.mrf.mxu0
        %v664 = vadd.f32 %v551, %v663
        %665 = vmatmul.f32.gmra.mxu0 %v339
        %v666 = vpop.f32.mrf.mxu0
        %v667 = vadd.f32 %v554, %v666
        %668 = vmatmul.f32.gmra.mxu0 %v342
        %v669 = vpop.f32.mrf.mxu0
        %v670 = vadd.f32 %v557, %v669
        %671 = vmatmul.f32.gmra.mxu0 %v345
        %v672 = vpop.f32.mrf.mxu0
        %v673 = vadd.f32 %v560, %v672
        %674 = vmatmul.f32.gmra.mxu0 %v348
        %v675 = vpop.f32.mrf.mxu0
        %v676 = vadd.f32 %v563, %v675
        %677 = vmatmul.f32.gmra.mxu0 %v351
        %v678 = vpop.f32.mrf.mxu0
        %v679 = vadd.f32 %v566, %v678
        %680 = vmatmul.f32.gmra.mxu0 %v354
        %v681 = vpop.f32.mrf.mxu0
        %v682 = vadd.f32 %v569, %v681
        %683 = vmatmul.f32.gmra.mxu0 %v357
        %v684 = vpop.f32.mrf.mxu0
        %v685 = vadd.f32 %v572, %v684
        %686 = vmatmul.f32.gmra.mxu0 %v360
        %v687 = vpop.f32.mrf.mxu0
        %v688 = vadd.f32 %v575, %v687
        %689 = vmatmul.f32.gmra.mxu0 %v363
        %v690 = vpop.f32.mrf.mxu0
        %v691 = vadd.f32 %v578, %v690
        %692 = vmatmul.f32.gmra.mxu0 %v366
        %v693 = vpop.f32.mrf.mxu0
        %v694 = vadd.f32 %v581, %v693
        %695 = vdwg.mxu0
        %696 = vmatpush.msra.mxu0 %v462
        %697 = vmatpush.msra.mxu0 %v460
        %698 = vmatpush.msra.mxu0 %v458
        %699 = vmatpush.msra.mxu0 %v456
        %700 = vmatpush.msra.mxu0 %v454
        %701 = vmatpush.msra.mxu0 %v452
        %702 = vmatpush.msra.mxu0 %v450
        %703 = vmatpush.msra.mxu0 %v448
        %704 = vmatpush.msra.mxu0 %v446
        %705 = vmatpush.msra.mxu0 %v444
        %706 = vmatpush.msra.mxu0 %v442
        %707 = vmatpush.msra.mxu0 %v440
        %708 = vmatpush.msra.mxu0 %v438
        %709 = vmatpush.msra.mxu0 %v436
        %710 = vmatpush.msra.mxu0 %v434
        %711 = vmatpush.msra.mxu0 %v432
        %712 = vmatmul.f32.gmra.mxu0 %v274
        %v713 = vpop.f32.mrf.mxu0
        %v714 = vadd.f32 %v601, %v713
        %715 = vmatmul.f32.gmra.mxu0 %v277
        %v716 = vpop.f32.mrf.mxu0
        %v717 = vadd.f32 %v604, %v716
        %718 = vmatmul.f32.gmra.mxu0 %v280
        %v719 = vpop.f32.mrf.mxu0
        %v720 = vadd.f32 %v607, %v719
        %721 = vmatmul.f32.gmra.mxu0 %v283
        %v722 = vpop.f32.mrf.mxu0
        %v723 = vadd.f32 %v610, %v722
        %724 = vmatmul.f32.gmra.mxu0 %v286
        %v725 = vpop.f32.mrf.mxu0
        %v726 = vadd.f32 %v613, %v725
        %727 = vmatmul.f32.gmra.mxu0 %v289
        %v728 = vpop.f32.mrf.mxu0
        %v729 = vadd.f32 %v616, %v728
        %730 = vmatmul.f32.gmra.mxu0 %v292
        %v731 = vpop.f32.mrf.mxu0
        %v732 = vadd.f32 %v619, %v731
        %733 = vmatmul.f32.gmra.mxu0 %v295
        %v734 = vpop.f32.mrf.mxu0
        %v735 = vadd.f32 %v622, %v734
        %736 = vmatmul.f32.gmra.mxu0 %v298
        %v737 = vpop.f32.mrf.mxu0
        %v738 = vadd.f32 %v625, %v737
        %739 = vmatmul.f32.gmra.mxu0 %v301
        %v740 = vpop.f32.mrf.mxu0
        %v741 = vadd.f32 %v628, %v740
        %742 = vmatmul.f32.gmra.mxu0 %v304
        %v743 = vpop.f32.mrf.mxu0
        %v744 = vadd.f32 %v631, %v743
        %745 = vmatmul.f32.gmra.mxu0 %v307
        %v746 = vpop.f32.mrf.mxu0
        %v747 = vadd.f32 %v634, %v746
        %748 = vmatmul.f32.gmra.mxu0 %v310
        %v749 = vpop.f32.mrf.mxu0
        %v750 = vadd.f32 %v637, %v749
        %751 = vmatmul.f32.gmra.mxu0 %v313
        %v752 = vpop.f32.mrf.mxu0
        %v753 = vadd.f32 %v640, %v752
        %754 = vmatmul.f32.gmra.mxu0 %v316
        %v755 = vpop.f32.mrf.mxu0
        %v756 = vadd.f32 %v643, %v755
        %757 = vmatmul.f32.gmra.mxu0 %v319
        %v758 = vpop.f32.mrf.mxu0
        %v759 = vadd.f32 %v646, %v758
        %760 = vmatmul.f32.gmra.mxu0 %v322
        %v761 = vpop.f32.mrf.mxu0
        %v762 = vadd.f32 %v649, %v761
        %763 = vmatmul.f32.gmra.mxu0 %v325
        %v764 = vpop.f32.mrf.mxu0
        %v765 = vadd.f32 %v652, %v764
        %766 = vmatmul.f32.gmra.mxu0 %v328
        %v767 = vpop.f32.mrf.mxu0
        %v768 = vadd.f32 %v655, %v767
        %769 = vmatmul.f32.gmra.mxu0 %v331
        %v770 = vpop.f32.mrf.mxu0
        %v771 = vadd.f32 %v658, %v770
        %772 = vmatmul.f32.gmra.mxu0 %v334
        %v773 = vpop.f32.mrf.mxu0
        %v774 = vadd.f32 %v661, %v773
        %775 = vmatmul.f32.gmra.mxu0 %v337
        %v776 = vpop.f32.mrf.mxu0
        %v777 = vadd.f32 %v664, %v776
        %778 = vmatmul.f32.gmra.mxu0 %v340
        %v779 = vpop.f32.mrf.mxu0
        %v780 = vadd.f32 %v667, %v779
        %781 = vmatmul.f32.gmra.mxu0 %v343
        %v782 = vpop.f32.mrf.mxu0
        %v783 = vadd.f32 %v670, %v782
        %784 = vmatmul.f32.gmra.mxu0 %v346
        %v785 = vpop.f32.mrf.mxu0
        %v786 = vadd.f32 %v673, %v785
        %787 = vmatmul.f32.gmra.mxu0 %v349
        %v788 = vpop.f32.mrf.mxu0
        %v789 = vadd.f32 %v676, %v788
        %790 = vmatmul.f32.gmra.mxu0 %v352
        %v791 = vpop.f32.mrf.mxu0
        %v792 = vadd.f32 %v679, %v791
        %793 = vmatmul.f32.gmra.mxu0 %v355
        %v794 = vpop.f32.mrf.mxu0
        %v795 = vadd.f32 %v682, %v794
        %796 = vmatmul.f32.gmra.mxu0 %v358
        %v797 = vpop.f32.mrf.mxu0
        %v798 = vadd.f32 %v685, %v797
        %799 = vmatmul.f32.gmra.mxu0 %v361
        %v800 = vpop.f32.mrf.mxu0
        %v801 = vadd.f32 %v688, %v800
        %802 = vmatmul.f32.gmra.mxu0 %v364
        %v803 = vpop.f32.mrf.mxu0
        %v804 = vadd.f32 %v691, %v803
        %805 = vmatmul.f32.gmra.mxu0 %v367
        %v806 = vpop.f32.mrf.mxu0
        %v807 = vadd.f32 %v694, %v806
        %808 = vdwg.mxu0
        %809 = vmatpush.msra.mxu0 %v399
        %810 = vmatpush.msra.mxu0 %v397
        %811 = vmatpush.msra.mxu0 %v395
        %812 = vmatpush.msra.mxu0 %v393
        %813 = vmatpush.msra.mxu0 %v391
        %814 = vmatpush.msra.mxu0 %v389
        %815 = vmatpush.msra.mxu0 %v387
        %816 = vmatpush.msra.mxu0 %v385
        %817 = vmatpush.msra.mxu0 %v383
        %818 = vmatpush.msra.mxu0 %v381
        %819 = vmatpush.msra.mxu0 %v379
        %820 = vmatpush.msra.mxu0 %v377
        %821 = vmatpush.msra.mxu0 %v375
        %822 = vmatpush.msra.mxu0 %v373
        %823 = vmatpush.msra.mxu0 %v371
        %824 = vmatpush.msra.mxu0 %v369
        %825 = vmatmul.f32.gmra.mxu0 %v272
        %v826 = vpop.f32.mrf.mxu0
        %v827 = vadd.f32 %v467, %v826
        %828 = vmatmul.f32.gmra.mxu0 %v275
        %v829 = vpop.f32.mrf.mxu0
        %v830 = vadd.f32 %v467, %v829
        %831 = vmatmul.f32.gmra.mxu0 %v278
        %v832 = vpop.f32.mrf.mxu0
        %v833 = vadd.f32 %v467, %v832
        %834 = vmatmul.f32.gmra.mxu0 %v281
        %v835 = vpop.f32.mrf.mxu0
        %v836 = vadd.f32 %v467, %v835
        %837 = vmatmul.f32.gmra.mxu0 %v284
        %v838 = vpop.f32.mrf.mxu0
        %v839 = vadd.f32 %v467, %v838
        %840 = vmatmul.f32.gmra.mxu0 %v287
        %v841 = vpop.f32.mrf.mxu0
        %v842 = vadd.f32 %v467, %v841
        %843 = vmatmul.f32.gmra.mxu0 %v290
        %v844 = vpop.f32.mrf.mxu0
        %v845 = vadd.f32 %v467, %v844
        %846 = vmatmul.f32.gmra.mxu0 %v293
        %v847 = vpop.f32.mrf.mxu0
        %v848 = vadd.f32 %v467, %v847
        %849 = vmatmul.f32.gmra.mxu0 %v296
        %v850 = vpop.f32.mrf.mxu0
        %v851 = vadd.f32 %v467, %v850
        %852 = vmatmul.f32.gmra.mxu0 %v299
        %v853 = vpop.f32.mrf.mxu0
        %v854 = vadd.f32 %v467, %v853
        %855 = vmatmul.f32.gmra.mxu0 %v302
        %v856 = vpop.f32.mrf.mxu0
        %v857 = vadd.f32 %v467, %v856
        %858 = vmatmul.f32.gmra.mxu0 %v305
        %v859 = vpop.f32.mrf.mxu0
        %v860 = vadd.f32 %v467, %v859
        %861 = vmatmul.f32.gmra.mxu0 %v308
        %v862 = vpop.f32.mrf.mxu0
        %v863 = vadd.f32 %v467, %v862
        %864 = vmatmul.f32.gmra.mxu0 %v311
        %v865 = vpop.f32.mrf.mxu0
        %v866 = vadd.f32 %v467, %v865
        %867 = vmatmul.f32.gmra.mxu0 %v314
        %v868 = vpop.f32.mrf.mxu0
        %v869 = vadd.f32 %v467, %v868
        %870 = vmatmul.f32.gmra.mxu0 %v317
        %v871 = vpop.f32.mrf.mxu0
        %v872 = vadd.f32 %v467, %v871
        %873 = vmatmul.f32.gmra.mxu0 %v320
        %v874 = vpop.f32.mrf.mxu0
        %v875 = vadd.f32 %v467, %v874
        %876 = vmatmul.f32.gmra.mxu0 %v323
        %v877 = vpop.f32.mrf.mxu0
        %v878 = vadd.f32 %v467, %v877
        %879 = vmatmul.f32.gmra.mxu0 %v326
        %v880 = vpop.f32.mrf.mxu0
        %v881 = vadd.f32 %v467, %v880
        %882 = vmatmul.f32.gmra.mxu0 %v329
        %v883 = vpop.f32.mrf.mxu0
        %v884 = vadd.f32 %v467, %v883
        %885 = vmatmul.f32.gmra.mxu0 %v332
        %v886 = vpop.f32.mrf.mxu0
        %v887 = vadd.f32 %v467, %v886
        %888 = vmatmul.f32.gmra.mxu0 %v335
        %v889 = vpop.f32.mrf.mxu0
        %v890 = vadd.f32 %v467, %v889
        %891 = vmatmul.f32.gmra.mxu0 %v338
        %v892 = vpop.f32.mrf.mxu0
        %v893 = vadd.f32 %v467, %v892
        %894 = vmatmul.f32.gmra.mxu0 %v341
        %v895 = vpop.f32.mrf.mxu0
        %v896 = vadd.f32 %v467, %v895
        %897 = vmatmul.f32.gmra.mxu0 %v344
        %v898 = vpop.f32.mrf.mxu0
        %v899 = vadd.f32 %v467, %v898
        %900 = vmatmul.f32.gmra.mxu0 %v347
        %v901 = vpop.f32.mrf.mxu0
        %v902 = vadd.f32 %v467, %v901
        %903 = vmatmul.f32.gmra.mxu0 %v350
        %v904 = vpop.f32.mrf.mxu0
        %v905 = vadd.f32 %v467, %v904
        %906 = vmatmul.f32.gmra.mxu0 %v353
        %v907 = vpop.f32.mrf.mxu0
        %v908 = vadd.f32 %v467, %v907
        %909 = vmatmul.f32.gmra.mxu0 %v356
        %v910 = vpop.f32.mrf.mxu0
        %v911 = vadd.f32 %v467, %v910
        %912 = vmatmul.f32.gmra.mxu0 %v359
        %v913 = vpop.f32.mrf.mxu0
        %v914 = vadd.f32 %v467, %v913
        %915 = vmatmul.f32.gmra.mxu0 %v362
        %v916 = vpop.f32.mrf.mxu0
        %v917 = vadd.f32 %v467, %v916
        %918 = vmatmul.f32.gmra.mxu0 %v365
        %v919 = vpop.f32.mrf.mxu0
        %v920 = vadd.f32 %v467, %v919
        %921 = vdwg.mxu0
        %922 = vmatpush.msra.mxu0 %v431
        %923 = vmatpush.msra.mxu0 %v429
        %924 = vmatpush.msra.mxu0 %v427
        %925 = vmatpush.msra.mxu0 %v425
        %926 = vmatpush.msra.mxu0 %v423
        %927 = vmatpush.msra.mxu0 %v421
        %928 = vmatpush.msra.mxu0 %v419
        %929 = vmatpush.msra.mxu0 %v417
        %930 = vmatpush.msra.mxu0 %v415
        %931 = vmatpush.msra.mxu0 %v413
        %932 = vmatpush.msra.mxu0 %v411
        %933 = vmatpush.msra.mxu0 %v409
        %934 = vmatpush.msra.mxu0 %v407
        %935 = vmatpush.msra.mxu0 %v405
        %936 = vmatpush.msra.mxu0 %v403
        %937 = vmatpush.msra.mxu0 %v401
        %938 = vmatmul.f32.gmra.mxu0 %v273
        %v939 = vpop.f32.mrf.mxu0
        %v940 = vadd.f32 %v827, %v939
        %941 = vmatmul.f32.gmra.mxu0 %v276
        %v942 = vpop.f32.mrf.mxu0
        %v943 = vadd.f32 %v830, %v942
        %944 = vmatmul.f32.gmra.mxu0 %v279
        %v945 = vpop.f32.mrf.mxu0
        %v946 = vadd.f32 %v833, %v945
        %947 = vmatmul.f32.gmra.mxu0 %v282
        %v948 = vpop.f32.mrf.mxu0
        %v949 = vadd.f32 %v836, %v948
        %950 = vmatmul.f32.gmra.mxu0 %v285
        %v951 = vpop.f32.mrf.mxu0
        %v952 = vadd.f32 %v839, %v951
        %953 = vmatmul.f32.gmra.mxu0 %v288
        %v954 = vpop.f32.mrf.mxu0
        %v955 = vadd.f32 %v842, %v954
        %956 = vmatmul.f32.gmra.mxu0 %v291
        %v957 = vpop.f32.mrf.mxu0
        %v958 = vadd.f32 %v845, %v957
        %959 = vmatmul.f32.gmra.mxu0 %v294
        %v960 = vpop.f32.mrf.mxu0
        %v961 = vadd.f32 %v848, %v960
        %962 = vmatmul.f32.gmra.mxu0 %v297
        %v963 = vpop.f32.mrf.mxu0
        %v964 = vadd.f32 %v851, %v963
        %965 = vmatmul.f32.gmra.mxu0 %v300
        %v966 = vpop.f32.mrf.mxu0
        %v967 = vadd.f32 %v854, %v966
        %968 = vmatmul.f32.gmra.mxu0 %v303
        %v969 = vpop.f32.mrf.mxu0
        %v970 = vadd.f32 %v857, %v969
        %971 = vmatmul.f32.gmra.mxu0 %v306
        %v972 = vpop.f32.mrf.mxu0
        %v973 = vadd.f32 %v860, %v972
        %974 = vmatmul.f32.gmra.mxu0 %v309
        %v975 = vpop.f32.mrf.mxu0
        %v976 = vadd.f32 %v863, %v975
        %977 = vmatmul.f32.gmra.mxu0 %v312
        %v978 = vpop.f32.mrf.mxu0
        %v979 = vadd.f32 %v866, %v978
        %980 = vmatmul.f32.gmra.mxu0 %v315
        %v981 = vpop.f32.mrf.mxu0
        %v982 = vadd.f32 %v869, %v981
        %983 = vmatmul.f32.gmra.mxu0 %v318
        %v984 = vpop.f32.mrf.mxu0
        %v985 = vadd.f32 %v872, %v984
        %986 = vmatmul.f32.gmra.mxu0 %v321
        %v987 = vpop.f32.mrf.mxu0
        %v988 = vadd.f32 %v875, %v987
        %989 = vmatmul.f32.gmra.mxu0 %v324
        %v990 = vpop.f32.mrf.mxu0
        %v991 = vadd.f32 %v878, %v990
        %992 = vmatmul.f32.gmra.mxu0 %v327
        %v993 = vpop.f32.mrf.mxu0
        %v994 = vadd.f32 %v881, %v993
        %995 = vmatmul.f32.gmra.mxu0 %v330
        %v996 = vpop.f32.mrf.mxu0
        %v997 = vadd.f32 %v884, %v996
        %998 = vmatmul.f32.gmra.mxu0 %v333
        %v999 = vpop.f32.mrf.mxu0
        %v1000 = vadd.f32 %v887, %v999
        %1001 = vmatmul.f32.gmra.mxu0 %v336
        %v1002 = vpop.f32.mrf.mxu0
        %v1003 = vadd.f32 %v890, %v1002
        %1004 = vmatmul.f32.gmra.mxu0 %v339
        %v1005 = vpop.f32.mrf.mxu0
        %v1006 = vadd.f32 %v893, %v1005
        %1007 = vmatmul.f32.gmra.mxu0 %v342
        %v1008 = vpop.f32.mrf.mxu0
        %v1009 = vadd.f32 %v896, %v1008
        %1010 = vmatmul.f32.gmra.mxu0 %v345
        %v1011 = vpop.f32.mrf.mxu0
        %v1012 = vadd.f32 %v899, %v1011
        %1013 = vmatmul.f32.gmra.mxu0 %v348
        %v1014 = vpop.f32.mrf.mxu0
        %v1015 = vadd.f32 %v902, %v1014
        %1016 = vmatmul.f32.gmra.mxu0 %v351
        %v1017 = vpop.f32.mrf.mxu0
        %v1018 = vadd.f32 %v905, %v1017
        %1019 = vmatmul.f32.gmra.mxu0 %v354
        %v1020 = vpop.f32.mrf.mxu0
        %v1021 = vadd.f32 %v908, %v1020
        %1022 = vmatmul.f32.gmra.mxu0 %v357
        %v1023 = vpop.f32.mrf.mxu0
        %v1024 = vadd.f32 %v911, %v1023
        %1025 = vmatmul.f32.gmra.mxu0 %v360
        %v1026 = vpop.f32.mrf.mxu0
        %v1027 = vadd.f32 %v914, %v1026
        %1028 = vmatmul.f32.gmra.mxu0 %v363
        %v1029 = vpop.f32.mrf.mxu0
        %v1030 = vadd.f32 %v917, %v1029
        %1031 = vmatmul.f32.gmra.mxu0 %v366
        %v1032 = vpop.f32.mrf.mxu0
        %v1033 = vadd.f32 %v920, %v1032
        %1034 = vdwg.mxu0
        %1035 = vmatpush.msra.mxu0 %v463
        %1036 = vmatpush.msra.mxu0 %v461
        %1037 = vmatpush.msra.mxu0 %v459
        %1038 = vmatpush.msra.mxu0 %v457
        %1039 = vmatpush.msra.mxu0 %v455
        %1040 = vmatpush.msra.mxu0 %v453
        %1041 = vmatpush.msra.mxu0 %v451
        %1042 = vmatpush.msra.mxu0 %v449
        %1043 = vmatpush.msra.mxu0 %v447
        %1044 = vmatpush.msra.mxu0 %v445
        %1045 = vmatpush.msra.mxu0 %v443
        %1046 = vmatpush.msra.mxu0 %v441
        %1047 = vmatpush.msra.mxu0 %v439
        %1048 = vmatpush.msra.mxu0 %v437
        %1049 = vmatpush.msra.mxu0 %v435
        %1050 = vmatpush.msra.mxu0 %v433
        %1051 = vmatmul.f32.gmra.mxu0 %v274
        %v1052 = vpop.f32.mrf.mxu0
        %v1053 = vadd.f32 %v940, %v1052
        %1054 = vmatmul.f32.gmra.mxu0 %v277
        %v1055 = vpop.f32.mrf.mxu0
        %v1056 = vadd.f32 %v943, %v1055
        %1057 = vmatmul.f32.gmra.mxu0 %v280
        %v1058 = vpop.f32.mrf.mxu0
        %v1059 = vadd.f32 %v946, %v1058
        %1060 = vmatmul.f32.gmra.mxu0 %v283
        %v1061 = vpop.f32.mrf.mxu0
        %v1062 = vadd.f32 %v949, %v1061
        %1063 = vmatmul.f32.gmra.mxu0 %v286
        %v1064 = vpop.f32.mrf.mxu0
        %v1065 = vadd.f32 %v952, %v1064
        %1066 = vmatmul.f32.gmra.mxu0 %v289
        %v1067 = vpop.f32.mrf.mxu0
        %v1068 = vadd.f32 %v955, %v1067
        %1069 = vmatmul.f32.gmra.mxu0 %v292
        %v1070 = vpop.f32.mrf.mxu0
        %v1071 = vadd.f32 %v958, %v1070
        %1072 = vmatmul.f32.gmra.mxu0 %v295
        %v1073 = vpop.f32.mrf.mxu0
        %v1074 = vadd.f32 %v961, %v1073
        %1075 = vmatmul.f32.gmra.mxu0 %v298
        %v1076 = vpop.f32.mrf.mxu0
        %v1077 = vadd.f32 %v964, %v1076
        %1078 = vmatmul.f32.gmra.mxu0 %v301
        %v1079 = vpop.f32.mrf.mxu0
        %v1080 = vadd.f32 %v967, %v1079
        %1081 = vmatmul.f32.gmra.mxu0 %v304
        %v1082 = vpop.f32.mrf.mxu0
        %v1083 = vadd.f32 %v970, %v1082
        %1084 = vmatmul.f32.gmra.mxu0 %v307
        %v1085 = vpop.f32.mrf.mxu0
        %v1086 = vadd.f32 %v973, %v1085
        %1087 = vmatmul.f32.gmra.mxu0 %v310
        %v1088 = vpop.f32.mrf.mxu0
        %v1089 = vadd.f32 %v976, %v1088
        %1090 = vmatmul.f32.gmra.mxu0 %v313
        %v1091 = vpop.f32.mrf.mxu0
        %v1092 = vadd.f32 %v979, %v1091
        %1093 = vmatmul.f32.gmra.mxu0 %v316
        %v1094 = vpop.f32.mrf.mxu0
        %v1095 = vadd.f32 %v982, %v1094
        %1096 = vmatmul.f32.gmra.mxu0 %v319
        %v1097 = vpop.f32.mrf.mxu0
        %v1098 = vadd.f32 %v985, %v1097
        %1099 = vmatmul.f32.gmra.mxu0 %v322
        %v1100 = vpop.f32.mrf.mxu0
        %v1101 = vadd.f32 %v988, %v1100
        %1102 = vmatmul.f32.gmra.mxu0 %v325
        %v1103 = vpop.f32.mrf.mxu0
        %v1104 = vadd.f32 %v991, %v1103
        %1105 = vmatmul.f32.gmra.mxu0 %v328
        %v1106 = vpop.f32.mrf.mxu0
        %v1107 = vadd.f32 %v994, %v1106
        %1108 = vmatmul.f32.gmra.mxu0 %v331
        %v1109 = vpop.f32.mrf.mxu0
        %v1110 = vadd.f32 %v997, %v1109
        %1111 = vmatmul.f32.gmra.mxu0 %v334
        %v1112 = vpop.f32.mrf.mxu0
        %v1113 = vadd.f32 %v1000, %v1112
        %1114 = vmatmul.f32.gmra.mxu0 %v337
        %v1115 = vpop.f32.mrf.mxu0
        %v1116 = vadd.f32 %v1003, %v1115
        %1117 = vmatmul.f32.gmra.mxu0 %v340
        %v1118 = vpop.f32.mrf.mxu0
        %v1119 = vadd.f32 %v1006, %v1118
        %1120 = vmatmul.f32.gmra.mxu0 %v343
        %v1121 = vpop.f32.mrf.mxu0
        %v1122 = vadd.f32 %v1009, %v1121
        %1123 = vmatmul.f32.gmra.mxu0 %v346
        %v1124 = vpop.f32.mrf.mxu0
        %v1125 = vadd.f32 %v1012, %v1124
        %1126 = vmatmul.f32.gmra.mxu0 %v349
        %v1127 = vpop.f32.mrf.mxu0
        %v1128 = vadd.f32 %v1015, %v1127
        %1129 = vmatmul.f32.gmra.mxu0 %v352
        %v1130 = vpop.f32.mrf.mxu0
        %v1131 = vadd.f32 %v1018, %v1130
        %1132 = vmatmul.f32.gmra.mxu0 %v355
        %v1133 = vpop.f32.mrf.mxu0
        %v1134 = vadd.f32 %v1021, %v1133
        %1135 = vmatmul.f32.gmra.mxu0 %v358
        %v1136 = vpop.f32.mrf.mxu0
        %v1137 = vadd.f32 %v1024, %v1136
        %1138 = vmatmul.f32.gmra.mxu0 %v361
        %v1139 = vpop.f32.mrf.mxu0
        %v1140 = vadd.f32 %v1027, %v1139
        %1141 = vmatmul.f32.gmra.mxu0 %v364
        %v1142 = vpop.f32.mrf.mxu0
        %v1143 = vadd.f32 %v1030, %v1142
        %1144 = vmatmul.f32.gmra.mxu0 %v367
        %v1145 = vpop.f32.mrf.mxu0
        %v1146 = vadd.f32 %v1033, %v1145
        %1147 = vdwg.mxu0
        %1148 = vst [vmem:[%s266] sm:$0xff] %v714
        %1149 = vst [vmem:[%s266 + $0x8] sm:$0xff] %v1053
        %1150 = vst [vmem:[%s266 + $0x10] sm:$0xff] %v717
        %1151 = vst [vmem:[%s266 + $0x18] sm:$0xff] %v1056
        %1152 = vst [vmem:[%s266 + $0x20] sm:$0xff] %v720
        %1153 = vst [vmem:[%s266 + $0x28] sm:$0xff] %v1059
        %1154 = vst [vmem:[%s266 + $0x30] sm:$0xff] %v723
        %1155 = vst [vmem:[%s266 + $0x38] sm:$0xff] %v1062
        %1156 = vst [vmem:[%s266 + $0x40] sm:$0xff] %v726
        %1157 = vst [vmem:[%s266 + $0x48] sm:$0xff] %v1065
        %1158 = vst [vmem:[%s266 + $0x50] sm:$0xff] %v729
        %1159 = vst [vmem:[%s266 + $0x58] sm:$0xff] %v1068
        %1160 = vst [vmem:[%s266 + $0x60] sm:$0xff] %v732
        %1161 = vst [vmem:[%s266 + $0x68] sm:$0xff] %v1071
        %1162 = vst [vmem:[%s266 + $0x70] sm:$0xff] %v735
        %1163 = vst [vmem:[%s266 + $0x78] sm:$0xff] %v1074
        %1164 = vst [vmem:[%s266 + $0x80] sm:$0xff] %v738
        %1165 = vst [vmem:[%s266 + $0x88] sm:$0xff] %v1077
        %1166 = vst [vmem:[%s266 + $0x90] sm:$0xff] %v741
        %1167 = vst [vmem:[%s266 + $0x98] sm:$0xff] %v1080
        %1168 = vst [vmem:[%s266 + $0xa0] sm:$0xff] %v744
        %1169 = vst [vmem:[%s266 + $0xa8] sm:$0xff] %v1083
        %1170 = vst [vmem:[%s266 + $0xb0] sm:$0xff] %v747
        %1171 = vst [vmem:[%s266 + $0xb8] sm:$0xff] %v1086
        %1172 = vst [vmem:[%s266 + $0xc0] sm:$0xff] %v750
        %1173 = vst [vmem:[%s266 + $0xc8] sm:$0xff] %v1089
        %1174 = vst [vmem:[%s266 + $0xd0] sm:$0xff] %v753
        %1175 = vst [vmem:[%s266 + $0xd8] sm:$0xff] %v1092
        %1176 = vst [vmem:[%s266 + $0xe0] sm:$0xff] %v756
        %1177 = vst [vmem:[%s266 + $0xe8] sm:$0xff] %v1095
        %1178 = vst [vmem:[%s266 + $0xf0] sm:$0xff] %v759
        %1179 = vst [vmem:[%s266 + $0xf8] sm:$0xff] %v1098
        %1180 = vst [vmem:[%s266 + $0x100] sm:$0xff] %v762
        %1181 = vst [vmem:[%s266 + $0x108] sm:$0xff] %v1101
        %1182 = vst [vmem:[%s266 + $0x110] sm:$0xff] %v765
        %1183 = vst [vmem:[%s266 + $0x118] sm:$0xff] %v1104
        %1184 = vst [vmem:[%s266 + $0x120] sm:$0xff] %v768
        %1185 = vst [vmem:[%s266 + $0x128] sm:$0xff] %v1107
        %1186 = vst [vmem:[%s266 + $0x130] sm:$0xff] %v771
        %1187 = vst [vmem:[%s266 + $0x138] sm:$0xff] %v1110
        %1188 = vst [vmem:[%s266 + $0x140] sm:$0xff] %v774
        %1189 = vst [vmem:[%s266 + $0x148] sm:$0xff] %v1113
        %1190 = vst [vmem:[%s266 + $0x150] sm:$0xff] %v777
        %1191 = vst [vmem:[%s266 + $0x158] sm:$0xff] %v1116
        %1192 = vst [vmem:[%s266 + $0x160] sm:$0xff] %v780
        %1193 = vst [vmem:[%s266 + $0x168] sm:$0xff] %v1119
        %1194 = vst [vmem:[%s266 + $0x170] sm:$0xff] %v783
        %1195 = vst [vmem:[%s266 + $0x178] sm:$0xff] %v1122
        %1196 = vst [vmem:[%s266 + $0x180] sm:$0xff] %v786
        %1197 = vst [vmem:[%s266 + $0x188] sm:$0xff] %v1125
        %1198 = vst [vmem:[%s266 + $0x190] sm:$0xff] %v789
        %1199 = vst [vmem:[%s266 + $0x198] sm:$0xff] %v1128
        %1200 = vst [vmem:[%s266 + $0x1a0] sm:$0xff] %v792
        %1201 = vst [vmem:[%s266 + $0x1a8] sm:$0xff] %v1131
        %1202 = vst [vmem:[%s266 + $0x1b0] sm:$0xff] %v795
        %1203 = vst [vmem:[%s266 + $0x1b8] sm:$0xff] %v1134
        %1204 = vst [vmem:[%s266 + $0x1c0] sm:$0xff] %v798
        %1205 = vst [vmem:[%s266 + $0x1c8] sm:$0xff] %v1137
        %1206 = vst [vmem:[%s266 + $0x1d0] sm:$0xff] %v801
        %1207 = vst [vmem:[%s266 + $0x1d8] sm:$0xff] %v1140
        %1208 = vst [vmem:[%s266 + $0x1e0] sm:$0xff] %v804
        %1209 = vst [vmem:[%s266 + $0x1e8] sm:$0xff] %v1143
        %1210 = vst [vmem:[%s266 + $0x1f0] sm:$0xff] %v807
        %1211 = vst [vmem:[%s266 + $0x1f8] sm:$0xff] %v1146
        %s1212 = sand.u32 %s121, 1
        %s1213 = scalar_lea.sflag [#allocation4], %s1212
        %s1214 = sand.u32 %s121, 1
        %s1215 = smul.addr %s1214, 512
        %s1216 = scalar_lea.vmem [#allocation8], %s1215
        // Predicated region
        $region45: #{sparse_input_linear.1} parent=31 // pred_check
          %p1217 = pneg %p131
        $region46: #{sparse_input_linear.1} parent=31 // pred_check_branch
          %1219 = sbr.rel (%p1217) target = $region48
        $region47: #{sparse_input_linear.1} parent=31 // pred_region
          %s1220 = smul.u32 32, %s26
          %s1221 = smul.u32 2, %s25
          %1223 = vsyncadd %s1213, 0
          %s1224 = smul.addr %s1220, 4
          %s1225 = sadd.s32 %s1221, %s1224
          %s1226 = smul.addr %s1225, 8
          %s1227 = scalar_lea.hbm %s3, %s1226
          %s1228 = sshll.u32 %s1216, 4
          %s1229 = int_to_ptr.vmem [resolvable:$true] %s1228
          %s1230 = sshll.u32 %s1227, 4
          %s1231 = int_to_ptr.hbm [resolvable:$true] %s1230
          %1236 = dma.vmem_to_hbm [thread:$0]  %s1229, 8192, %s1231, %s1213, 256, 512, 16
        $region48: #{sparse_input_linear.1} parent=31 // pred_fallthru
          _
      $region32: #{sparse_input_linear.1} parent=5 // pred_fallthru
        _
      %p1237 = scmp.le.s32.totalorder 2, %s16
      // Predicated region
      $region49: #{sparse_input_linear.1} parent=5 // pred_check
        %p1238 = pneg %p1237
      $region50: #{sparse_input_linear.1} parent=5 // pred_check_branch
        %1240 = sbr.rel (%p1238) target = $region52
      $region51: #{sparse_input_linear.1} parent=5 // pred_region
        %s1241 = ssub.s32 %s16, 2
        // Predicated region
        $region53: #{sparse_input_linear.1} parent=51 // pred_check
          %p1242 = pneg %p137
        $region54: #{sparse_input_linear.1} parent=51 // pred_check_branch
          %1244 = sbr.rel (%p1242) target = $region56
        $region55: #{sparse_input_linear.1} parent=51 // pred_region
          %s1245 = sand.u32 %s122, 1
          %s1246 = scalar_lea.sflag [#allocation4], %s1245
          %s1247 = sand.u32 %s122, 1
          %s1248 = smul.addr %s1247, 512
          %s1249 = scalar_lea.vmem [#allocation8], %s1248
          %1251 = dma.done %s1246, 8192
        $region56: #{sparse_input_linear.1} parent=51 // pred_fallthru
          _
      $region52: #{sparse_input_linear.1} parent=5 // pred_fallthru
        _
    $region6: #{sparse_input_linear.1} parent=1 // loop_footer
      %s20 = sadd.s32 1, %s16
    $region7: #{sparse_input_linear.1} parent=1 // loop_footer_branch
      %15 = sbr.rel target = $region3
    $region8: #{sparse_input_linear.1} parent=1 // loop_exit
      _
    %1252 = vsyncpa [#allocation3], 1
    %s1253 = scalar_lea.sflag [#allocation3], 1
    %1254 = vsyncpa %s1253, 1
    %1255 = vsyncpa [#allocation6], 1
    %s1256 = scalar_lea.sflag [#allocation6], 1
    %1257 = vsyncpa %s1256, 1
    %1258 = vsyncpa [#allocation4], 1
    %s1259 = scalar_lea.sflag [#allocation4], 1
    %1260 = vsyncpa %s1259, 1

</llo_original>
